<compile_context>
chip_gen: v7x
topology: tpu7x:2x2x1
jax: 0.10.0
libtpu: 0.0.40
codegen_flags: <defaults>
</compile_context>

<pallas_src>
import jax
import jax.numpy as jnp
from jax.experimental import pallas as pl
from jax.experimental.pallas import tpu as pltpu

# Module hyper-parameters (globals in the original script); kept SMALL here.
pic_dim = 1
img_size = 16


def _round_up(x, m):
    return (x + m - 1) // m * m


def generator_kernel(z_ref, l_ref, w1z_ref, w1l_ref, b1_ref, w2_ref, b2_ref, o_ref):
    """Fused (split) fc1 -> ReLU -> fc2 -> tanh for one batch tile."""
    # fc1, with torch.cat fused as a split matmul: x @ W1 == z @ W1z + label @ W1l.
    # bf16 operands on the MXU, f32 accumulation.
    h = jnp.dot(z_ref[...], w1z_ref[...], preferred_element_type=jnp.float32)
    h = h + jnp.dot(l_ref[...], w1l_ref[...], preferred_element_type=jnp.float32)
    h = jnp.maximum(h + b1_ref[...], 0.0)            # bias + ReLU in f32

    # fc2: bf16 operands, f32 accumulation; bias + tanh in f32.
    y = jnp.dot(h.astype(jnp.bfloat16), w2_ref[...],
                preferred_element_type=jnp.float32)
    o_ref[...] = jnp.tanh(y + b2_ref[...])


def generator_forward(z, label, params, *, tm_max=128):
    """JAX glue: pad batch to the sublane/MXU granule, tile it over a
    'parallel' grid axis, and run one fused Pallas kernel."""
    w1z, w1l, b1, w2, b2 = params
    B = z.shape[0]
    z_dim = z.shape[1]
    cond_num = label.shape[1]
    hidden = w2.shape[0]
    out_dim = w2.shape[1]

    # Pad batch to a multiple of 8 (f32 sublane), tile up to tm_max rows.
    Bp = _round_up(B, 8)
    tm = min(tm_max, Bp)
    Bp = _round_up(Bp, tm)
    pad = Bp - B

    zb = jnp.pad(z.astype(jnp.bfloat16), ((0, pad), (0, 0)))
    lb = jnp.pad(label.astype(jnp.bfloat16), ((0, pad), (0, 0)))

    in1 = z_dim + cond_num
    flops = 2 * Bp * (in1 * hidden + hidden * out_dim)
    transcendentals = Bp * out_dim  # tanh
    bytes_accessed = (
        zb.size * 2 + lb.size * 2
        + w1z.size * 2 + w1l.size * 2 + w2.size * 2
        + b1.size * 4 + b2.size * 4
        + Bp * out_dim * 4
    )

    out = pl.pallas_call(
        generator_kernel,
        out_shape=jax.ShapeDtypeStruct((Bp, out_dim), jnp.float32),
        grid_spec=pltpu.PrefetchScalarGridSpec(
            num_scalar_prefetch=0,
            grid=(Bp // tm,),
            in_specs=[
                pl.BlockSpec((tm, z_dim), lambda i: (i, 0)),
                pl.BlockSpec((tm, cond_num), lambda i: (i, 0)),
                pl.BlockSpec(w1z.shape, lambda i: (0, 0)),
                pl.BlockSpec(w1l.shape, lambda i: (0, 0)),
                pl.BlockSpec(b1.shape, lambda i: (0, 0)),
                pl.BlockSpec(w2.shape, lambda i: (0, 0)),
                pl.BlockSpec(b2.shape, lambda i: (0, 0)),
            ],
            # out_dim = 256 is a multiple of 128 -> lane-dense (unmasked) stores.
            out_specs=pl.BlockSpec((tm, out_dim), lambda i: (i, 0)),
        ),
        compiler_params=pltpu.CompilerParams(
            dimension_semantics=("parallel",),
        ),
        cost_estimate=pl.CostEstimate(
            flops=flops,
            transcendentals=transcendentals,
            bytes_accessed=bytes_accessed,
        ),
    )(zb, lb, w1z, w1l, b1, w2, b2)

    return out[:B]


def init_params(key, z_dim, cond_num):
    """Every parameter ~ Normal(mean=0, std=0.02), matching
    nn.init.normal_(param, mean=0, std=0.02). W1 is pre-split into its
    z-rows and label-rows so the kernel can fuse the concat; matmul
    weights are stored in bf16, biases in f32."""
    k1, k2, k3, k4 = jax.random.split(key, 4)
    in1 = z_dim + cond_num
    hidden = 128 * pic_dim
    out_dim = img_size * img_size * pic_dim
    w1 = 0.02 * jax.random.normal(k1, (in1, hidden), dtype=jnp.float32)
    b1 = 0.02 * jax.random.normal(k2, (1, hidden), dtype=jnp.float32)
    w2 = 0.02 * jax.random.normal(k3, (hidden, out_dim), dtype=jnp.float32)
    b2 = 0.02 * jax.random.normal(k4, (1, out_dim), dtype=jnp.float32)
    w1z = w1[:z_dim].astype(jnp.bfloat16)
    w1l = w1[z_dim:].astype(jnp.bfloat16)
    return w1z, w1l, b1, w2.astype(jnp.bfloat16), b2


if __name__ == "__main__":
    z_dim = 16
    cond_num = 8
    batch = 4

    key = jax.random.PRNGKey(0)
    kp, kz, kl = jax.random.split(key, 3)

    params = init_params(kp, z_dim, cond_num)
    z = jax.random.normal(kz, (batch, z_dim), dtype=jnp.float32)
    # one-hot-like conditioning labels
    label = jax.nn.one_hot(
        jax.random.randint(kl, (batch,), 0, cond_num), cond_num, dtype=jnp.float32
    )

    out = generator_forward(z, label, params)
    out = jax.block_until_ready(out)

    # Pure-JAX reference mirroring the kernel's bf16-operand / f32-accum math.
    w1z, w1l, b1, w2, b2 = params
    zq = z.astype(jnp.bfloat16).astype(jnp.float32)
    lq = label.astype(jnp.bfloat16).astype(jnp.float32)
    w1_f32 = jnp.concatenate([w1z, w1l], axis=0).astype(jnp.float32)
    x = jnp.concatenate([zq, lq], axis=1)
    h = jnp.maximum(x @ w1_f32 + b1, 0.0)
    ref = jnp.tanh(
        h.astype(jnp.bfloat16).astype(jnp.float32) @ w2.astype(jnp.float32) + b2
    )

    assert out.shape == (batch, img_size * img_size * pic_dim)
    assert jnp.allclose(out, ref, atol=1e-3, rtol=1e-3)

    print("KERNEL_OK")
</pallas_src>

<mosaic_0001>
module attributes {stable_mosaic.version = 11 : i64} {
  func.func @generator_kernel(%arg0: i32, %arg1: memref<8x16xbf16, #tpu.memory_space<vmem>>, %arg2: memref<8x8xbf16, #tpu.memory_space<vmem>>, %arg3: memref<16x128xbf16, #tpu.memory_space<vmem>>, %arg4: memref<8x128xbf16, #tpu.memory_space<vmem>>, %arg5: memref<1x128xf32, #tpu.memory_space<vmem>>, %arg6: memref<128x256xbf16, #tpu.memory_space<vmem>>, %arg7: memref<1x256xf32, #tpu.memory_space<vmem>>, %arg8: memref<8x256xf32, #tpu.memory_space<vmem>>) attributes {dimension_semantics = [#tpu.dimension_semantics<parallel>], iteration_bounds = array<i64: 1>, scalar_prefetch = 0 : i64, scratch_operands = 0 : i64, tpu.core_type = #tpu.core_type<tc>, window_params = [{transform_indices = @transform_0, window_bounds = array<i64: 8, 16>}, {transform_indices = @transform_1, window_bounds = array<i64: 8, 8>}, {pipeline_mode = #tpu.pipeline_mode<synchronous>, transform_indices = @transform_2, window_bounds = array<i64: 16, 128>}, {pipeline_mode = #tpu.pipeline_mode<synchronous>, transform_indices = @transform_3, window_bounds = array<i64: 8, 128>}, {pipeline_mode = #tpu.pipeline_mode<synchronous>, transform_indices = @transform_4, window_bounds = array<i64: 1, 128>}, {pipeline_mode = #tpu.pipeline_mode<synchronous>, transform_indices = @transform_5, window_bounds = array<i64: 128, 256>}, {pipeline_mode = #tpu.pipeline_mode<synchronous>, transform_indices = @transform_6, window_bounds = array<i64: 1, 256>}, {transform_indices = @transform_7, window_bounds = array<i64: 8, 256>}]} {
    %c0 = arith.constant 0 : index
    %c0_0 = arith.constant 0 : index
    %0 = vector.load %arg1[%c0, %c0_0] : memref<8x16xbf16, #tpu.memory_space<vmem>>, vector<8x16xbf16>
    %c0_1 = arith.constant 0 : index
    %c0_2 = arith.constant 0 : index
    %1 = vector.load %arg3[%c0_1, %c0_2] : memref<16x128xbf16, #tpu.memory_space<vmem>>, vector<16x128xbf16>
    %cst = arith.constant dense<0.000000e+00> : vector<8x128xf32>
    %2 = tpu.matmul %0, %1, %cst {dimension_numbers = #tpu.dot_dimension_numbers<[1], [0], [0], [1], [0, 0, 1, 1], [], []>} : vector<8x16xbf16>, vector<16x128xbf16>, vector<8x128xf32> -> vector<8x128xf32>
    %c0_3 = arith.constant 0 : index
    %c0_4 = arith.constant 0 : index
    %3 = vector.load %arg2[%c0_3, %c0_4] : memref<8x8xbf16, #tpu.memory_space<vmem>>, vector<8x8xbf16>
    %c0_5 = arith.constant 0 : index
    %c0_6 = arith.constant 0 : index
    %4 = vector.load %arg4[%c0_5, %c0_6] : memref<8x128xbf16, #tpu.memory_space<vmem>>, vector<8x128xbf16>
    %cst_7 = arith.constant dense<0.000000e+00> : vector<8x128xf32>
    %5 = tpu.matmul %3, %4, %cst_7 {dimension_numbers = #tpu.dot_dimension_numbers<[1], [0], [0], [1], [0, 0, 1, 1], [], []>} : vector<8x8xbf16>, vector<8x128xbf16>, vector<8x128xf32> -> vector<8x128xf32>
    %6 = arith.addf %2, %5 : vector<8x128xf32>
    %c0_8 = arith.constant 0 : index
    %c0_9 = arith.constant 0 : index
    %7 = vector.load %arg5[%c0_8, %c0_9] : memref<1x128xf32, #tpu.memory_space<vmem>>, vector<1x128xf32>
    %8 = vector.broadcast %7 : vector<1x128xf32> to vector<8x128xf32>
    %9 = arith.addf %6, %8 : vector<8x128xf32>
    %cst_10 = arith.constant 0.000000e+00 : f32
    %10 = vector.broadcast %cst_10 : f32 to vector<8x128xf32>
    %11 = arith.maximumf %9, %10 : vector<8x128xf32>
    %12 = arith.truncf %11 : vector<8x128xf32> to vector<8x128xbf16>
    %c0_11 = arith.constant 0 : index
    %c0_12 = arith.constant 0 : index
    %13 = vector.load %arg6[%c0_11, %c0_12] : memref<128x256xbf16, #tpu.memory_space<vmem>>, vector<128x256xbf16>
    %cst_13 = arith.constant dense<0.000000e+00> : vector<8x256xf32>
    %14 = tpu.matmul %12, %13, %cst_13 {dimension_numbers = #tpu.dot_dimension_numbers<[1], [0], [0], [1], [0, 0, 1, 1], [], []>} : vector<8x128xbf16>, vector<128x256xbf16>, vector<8x256xf32> -> vector<8x256xf32>
    %c0_14 = arith.constant 0 : index
    %c0_15 = arith.constant 0 : index
    %15 = vector.load %arg7[%c0_14, %c0_15] : memref<1x256xf32, #tpu.memory_space<vmem>>, vector<1x256xf32>
    %16 = vector.broadcast %15 : vector<1x256xf32> to vector<8x256xf32>
    %17 = arith.addf %14, %16 : vector<8x256xf32>
    %18 = math.tanh %17 : vector<8x256xf32>
    %c0_16 = arith.constant 0 : index
    %c0_17 = arith.constant 0 : index
    %19 = vector.load %arg8[%c0_16, %c0_17] : memref<8x256xf32, #tpu.memory_space<vmem>>, vector<8x256xf32>
    tpu.vector_store %arg8[%c0_16, %c0_17], %18 {strides = array<i32>} : memref<8x256xf32, #tpu.memory_space<vmem>>, vector<8x256xf32>,
    return
  }
  func.func @transform_0(%arg0: i32) -> (i32, i32) {
    %c0_i32 = arith.constant 0 : i32
    %c0_i32_0 = arith.constant 0 : i32
    return %arg0, %c0_i32 : i32, i32
  }
  func.func @transform_1(%arg0: i32) -> (i32, i32) {
    %c0_i32 = arith.constant 0 : i32
    %c0_i32_0 = arith.constant 0 : i32
    return %arg0, %c0_i32 : i32, i32
  }
  func.func @transform_2(%arg0: i32) -> (i32, i32) {
    %c0_i32 = arith.constant 0 : i32
    %c0_i32_0 = arith.constant 0 : i32
    %c0_i32_1 = arith.constant 0 : i32
    return %c0_i32, %c0_i32_0 : i32, i32
  }
  func.func @transform_3(%arg0: i32) -> (i32, i32) {
    %c0_i32 = arith.constant 0 : i32
    %c0_i32_0 = arith.constant 0 : i32
    %c0_i32_1 = arith.constant 0 : i32
    return %c0_i32, %c0_i32_0 : i32, i32
  }
  func.func @transform_4(%arg0: i32) -> (i32, i32) {
    %c0_i32 = arith.constant 0 : i32
    %c0_i32_0 = arith.constant 0 : i32
    %c0_i32_1 = arith.constant 0 : i32
    return %c0_i32, %c0_i32_0 : i32, i32
  }
  func.func @transform_5(%arg0: i32) -> (i32, i32) {
    %c0_i32 = arith.constant 0 : i32
    %c0_i32_0 = arith.constant 0 : i32
    %c0_i32_1 = arith.constant 0 : i32
    return %c0_i32, %c0_i32_0 : i32, i32
  }
  func.func @transform_6(%arg0: i32) -> (i32, i32) {
    %c0_i32 = arith.constant 0 : i32
    %c0_i32_0 = arith.constant 0 : i32
    %c0_i32_1 = arith.constant 0 : i32
    return %c0_i32, %c0_i32_0 : i32, i32
  }
  func.func @transform_7(%arg0: i32) -> (i32, i32) {
    %c0_i32 = arith.constant 0 : i32
    %c0_i32_0 = arith.constant 0 : i32
    return %arg0, %c0_i32 : i32, i32
  }
}

</mosaic_0001>

<llo_original>
// kernel: tpu_custom_call.1
$region0: #{tpu_custom_call.1}
  #allocation0 [shape = 'u32[]', space=smem, size = 0x4, offset = 0x4, fixed_abs, tag = 'smem constant byte address 0x4 - core index']
  #allocation1 [shape = 'u32[144,128]{1,0:T(1,128)}', space=vmem, size = 0x12000, scoped, tag = 'internal scratch']
  %s0 = inlined_call_operand.hbm [shape: bf16[8,16], index: 0, kind: input, shape index: {}]
  %s1 = inlined_call_operand.hbm [shape: bf16[8,8], index: 1, kind: input, shape index: {}]
  %s2 = inlined_call_operand.hbm [shape: bf16[16,128], index: 2, kind: input, shape index: {}]
  %s3 = inlined_call_operand.vmem [shape: bf16[8,128], index: 3, kind: input, shape index: {}]
  %s4 = inlined_call_operand.vmem [shape: f32[1,128], index: 4, kind: input, shape index: {}]
  %s5 = inlined_call_operand.hbm [shape: bf16[128,256], index: 5, kind: input, shape index: {}]
  %s6 = inlined_call_operand.vmem [shape: f32[1,256], index: 6, kind: input, shape index: {}]
  %s7 = inlined_call_operand.hbm [shape: f32[8,256], index: 7, kind: output, shape index: {}]
  %s8 = sld [smem:[#allocation0]]
  $region54: #{tpu_custom_call.1} parent=0
    _
  %s10 = ssub.s32 1, %s8
  %s11 = scalar_select 0, %s10, %s8
  $region1: #{tpu_custom_call.1} parent=0
    #allocation2 [shape = 'u8[2048]{0}', space=vmem, size = 0x800, scoped, tag = 'input window, operand 0, single buffered']
    #allocation3 [shape = 's32[1]{0}', space=sflag, size = 0x4, scoped, tag = 'scoped memory for tpu_custom_call.1']
    #allocation4 [shape = 's32[1]{0}', space=sflag, size = 0x4, scoped, tag = 'scoped memory for tpu_custom_call.1']
    #allocation5 [shape = 'u8[2048]{0}', space=vmem, size = 0x800, scoped, tag = 'input window, operand 1, single buffered']
    #allocation6 [shape = 's32[1]{0}', space=sflag, size = 0x4, scoped, tag = 'scoped memory for tpu_custom_call.1']
    #allocation7 [shape = 'u8[4096]{0}', space=vmem, size = 0x1000, scoped, tag = 'input window, operand 2, single buffered']
    #allocation8 [shape = 'u8[65536]{0}', space=vmem, size = 0x10000, scoped, tag = 'input window, operand 5, single buffered']
    #allocation9 [shape = 's32[1]{0}', space=sflag, size = 0x4, scoped, tag = 'scoped memory for tpu_custom_call.1']
    #allocation10 [shape = 'u8[8192]{0}', space=vmem, size = 0x2000, scoped, tag = 'output window, operand 0, single buffered']
    %12 = vsyncpa [#allocation3], 0
    %13 = vsyncpa [#allocation6], 0
    %14 = vsyncpa [#allocation9], 0
    %15 = vsyncpa [#allocation4], 0
    // Predicated region
    $region2: #{tpu_custom_call.1} parent=1 // pred_check
      _
    $region3: #{tpu_custom_call.1} parent=1 // pred_check_branch
      %17 = sbr.rel (0) target = $region5
    $region4: #{tpu_custom_call.1} parent=1 // pred_region
      %s19 = ssub.s32 64, 64
      %20 = vsyncadd [#allocation3], %s19
      %s22 = sshll.u32 [#allocation2], 4
      %s23 = int_to_ptr.vmem [resolvable:$true] %s22
      %25 = dma.hbm_to_vmem [thread:$0]  %s0, 64, %s23, [#allocation3]
    $region5: #{tpu_custom_call.1} parent=1 // pred_fallthru
      _
    // Predicated region
    $region6: #{tpu_custom_call.1} parent=1 // pred_check
      _
    $region7: #{tpu_custom_call.1} parent=1 // pred_check_branch
      %27 = sbr.rel (0) target = $region9
    $region8: #{tpu_custom_call.1} parent=1 // pred_region
      %s29 = ssub.s32 64, 64
      %30 = vsyncadd [#allocation6], %s29
      %s32 = sshll.u32 [#allocation5], 4
      %s33 = int_to_ptr.vmem [resolvable:$true] %s32
      %35 = dma.hbm_to_vmem [thread:$0]  %s1, 64, %s33, [#allocation6]
    $region9: #{tpu_custom_call.1} parent=1 // pred_fallthru
      _
    // Predicated region
    $region10: #{tpu_custom_call.1} parent=1 // pred_check
      _
    $region11: #{tpu_custom_call.1} parent=1 // pred_check_branch
      %37 = sbr.rel (0) target = $region13
    $region12: #{tpu_custom_call.1} parent=1 // pred_region
      %s39 = ssub.s32 128, 128
      %40 = vsyncadd [#allocation6], %s39
      %s41 = sshll.u32 [#allocation7], 4
      %s42 = int_to_ptr.vmem [resolvable:$true] %s41
      %47 = dma.hbm_to_vmem [thread:$0]  %s2, 128, %s42, [#allocation6], 64, 64, 4
    $region13: #{tpu_custom_call.1} parent=1 // pred_fallthru
      _
    // Predicated region
    $region14: #{tpu_custom_call.1} parent=1 // pred_check
      _
    $region15: #{tpu_custom_call.1} parent=1 // pred_check_branch
      %49 = sbr.rel (0) target = $region17
    $region16: #{tpu_custom_call.1} parent=1 // pred_region
      _
    $region17: #{tpu_custom_call.1} parent=1 // pred_fallthru
      _
    // Predicated region
    $region18: #{tpu_custom_call.1} parent=1 // pred_check
      _
    $region19: #{tpu_custom_call.1} parent=1 // pred_check_branch
      %51 = sbr.rel (0) target = $region21
    $region20: #{tpu_custom_call.1} parent=1 // pred_region
      _
    $region21: #{tpu_custom_call.1} parent=1 // pred_fallthru
      _
    // Predicated region
    $region22: #{tpu_custom_call.1} parent=1 // pred_check
      _
    $region23: #{tpu_custom_call.1} parent=1 // pred_check_branch
      %53 = sbr.rel (0) target = $region25
    $region24: #{tpu_custom_call.1} parent=1 // pred_region
      %s55 = ssub.s32 2048, 2048
      %56 = vsyncadd [#allocation9], %s55
      %s57 = sshll.u32 [#allocation8], 4
      %s58 = int_to_ptr.vmem [resolvable:$true] %s57
      %63 = dma.hbm_to_vmem [thread:$0]  %s5, 2048, %s58, [#allocation9], 128, 128, 8
    $region25: #{tpu_custom_call.1} parent=1 // pred_fallthru
      _
    // Predicated region
    $region26: #{tpu_custom_call.1} parent=1 // pred_check
      _
    $region27: #{tpu_custom_call.1} parent=1 // pred_check_branch
      %65 = sbr.rel (0) target = $region29
    $region28: #{tpu_custom_call.1} parent=1 // pred_region
      _
    $region29: #{tpu_custom_call.1} parent=1 // pred_fallthru
      _
    // Predicated region
    $region30: #{tpu_custom_call.1} parent=1 // pred_check
      _
    $region31: #{tpu_custom_call.1} parent=1 // pred_check_branch
      %67 = sbr.rel (0) target = $region33
    $region32: #{tpu_custom_call.1} parent=1 // pred_region
      %68 = dma.done [#allocation3], 64
    $region33: #{tpu_custom_call.1} parent=1 // pred_fallthru
      _
    // Predicated region
    $region34: #{tpu_custom_call.1} parent=1 // pred_check
      _
    $region35: #{tpu_custom_call.1} parent=1 // pred_check_branch
      %70 = sbr.rel (0) target = $region37
    $region36: #{tpu_custom_call.1} parent=1 // pred_region
      %71 = dma.done [#allocation6], 64
    $region37: #{tpu_custom_call.1} parent=1 // pred_fallthru
      _
    // Predicated region
    $region38: #{tpu_custom_call.1} parent=1 // pred_check
      _
    $region39: #{tpu_custom_call.1} parent=1 // pred_check_branch
      %73 = sbr.rel (0) target = $region41
    $region40: #{tpu_custom_call.1} parent=1 // pred_region
      %74 = dma.done [#allocation6], 128
    $region41: #{tpu_custom_call.1} parent=1 // pred_fallthru
      _
    // Predicated region
    $region42: #{tpu_custom_call.1} parent=1 // pred_check
      _
    $region43: #{tpu_custom_call.1} parent=1 // pred_check_branch
      %76 = sbr.rel (0) target = $region45
    $region44: #{tpu_custom_call.1} parent=1 // pred_region
      %77 = dma.done [#allocation9], 2048
    $region45: #{tpu_custom_call.1} parent=1 // pred_fallthru
      _
    %v79 = vld [vmem:[#allocation2] sm:$0xf]
    %v80 = vld [vmem:[#allocation7] sm:$0xf]
    %v81 = vld [vmem:[#allocation7 + $0x4] sm:$0xf]
    %v82 = vld [vmem:[#allocation5] sm:$0xf]
    %v83 = vld [vmem:[%s3] sm:$0xf]
    %vm84 = vcmask 64512
    %v86 = vsel %vm84, %v82, 0
    %vm88 = vcmask 1043456
    %v90 = vsel %vm88, %v83, 0
    %92 = vmatprep.subr.bf16.mxu0 0
    %93 = vmatpush1.bf16.msra.mxu0 %v90
    %94 = vmatprep.subr.bf16.mxu0 0
    %95 = vmatpush1.bf16.msra.mxu0 0
    %96 = vmatprep.subr.bf16.mxu0 0
    %97 = vmatpush1.bf16.msra.mxu0 0
    %98 = vmatprep.subr.bf16.mxu0 0
    %99 = vmatpush1.bf16.msra.mxu0 0
    %100 = vmatprep.subr.bf16.mxu0 0
    %101 = vmatpush1.bf16.msra.mxu0 0
    %102 = vmatprep.subr.bf16.mxu0 0
    %103 = vmatpush1.bf16.msra.mxu0 0
    %104 = vmatprep.subr.bf16.mxu0 0
    %105 = vmatpush1.bf16.msra.mxu0 0
    %106 = vmatprep.subr.bf16.mxu0 0
    %107 = vmatpush1.bf16.msra.mxu0 0
    %108 = vmatprep.subr.bf16.mxu0 0
    %109 = vmatpush1.bf16.msra.mxu0 0
    %110 = vmatprep.subr.bf16.mxu0 0
    %111 = vmatpush1.bf16.msra.mxu0 0
    %112 = vmatprep.subr.bf16.mxu0 0
    %113 = vmatpush1.bf16.msra.mxu0 0
    %114 = vmatprep.subr.bf16.mxu0 0
    %115 = vmatpush1.bf16.msra.mxu0 0
    %116 = vmatprep.subr.bf16.mxu0 0
    %117 = vmatpush1.bf16.msra.mxu0 0
    %118 = vmatprep.subr.bf16.mxu0 0
    %119 = vmatpush1.bf16.msra.mxu0 0
    %120 = vmatprep.subr.bf16.mxu0 0
    %121 = vmatpush1.bf16.msra.mxu0 0
    %122 = vmatprep.subr.bf16.mxu0 0
    %123 = vmatpush1.bf16.msra.mxu0 0
    %124 = vmatprep.mubr.bf16.mxu0 0
    %125 = vmatmul.mubr.bf16.gmra.mrb[0].mxu0 %v86
    %v126 = vpop.f32.mrb[0].mxu0
    %v127 = vadd.f32 0.0, %v126
    %v128 = vpop.f32.mrb[0].mxu0
    %v129 = vpop.f32.mrb[0].mxu0
    %v130 = vpop.f32.mrb[0].mxu0
    %131 = vdwg.mxu0
    %v134 = vunpack.c.l.b16 %v80
    %v135 = vunpack.c.l.b16 %v81
    %v136 = vpack.c.b16 %v135, %v134
    %vm138 = vcmask 130048
    %v140 = vsel %vm138, %v79, 0
    %142 = vmatprep.subr.bf16.mxu0 0
    %143 = vmatpush1.bf16.msra.mxu0 %v136
    %144 = vmatprep.subr.bf16.mxu0 0
    %145 = vmatpush1.bf16.msra.mxu0 0
    %146 = vmatprep.subr.bf16.mxu0 0
    %147 = vmatpush1.bf16.msra.mxu0 0
    %148 = vmatprep.subr.bf16.mxu0 0
    %149 = vmatpush1.bf16.msra.mxu0 0
    %150 = vmatprep.subr.bf16.mxu0 0
    %151 = vmatpush1.bf16.msra.mxu0 0
    %152 = vmatprep.subr.bf16.mxu0 0
    %153 = vmatpush1.bf16.msra.mxu0 0
    %154 = vmatprep.subr.bf16.mxu0 0
    %155 = vmatpush1.bf16.msra.mxu0 0
    %156 = vmatprep.subr.bf16.mxu0 0
    %157 = vmatpush1.bf16.msra.mxu0 0
    %158 = vmatprep.subr.bf16.mxu0 0
    %159 = vmatpush1.bf16.msra.mxu0 0
    %160 = vmatprep.subr.bf16.mxu0 0
    %161 = vmatpush1.bf16.msra.mxu0 0
    %162 = vmatprep.subr.bf16.mxu0 0
    %163 = vmatpush1.bf16.msra.mxu0 0
    %164 = vmatprep.subr.bf16.mxu0 0
    %165 = vmatpush1.bf16.msra.mxu0 0
    %166 = vmatprep.subr.bf16.mxu0 0
    %167 = vmatpush1.bf16.msra.mxu0 0
    %168 = vmatprep.subr.bf16.mxu0 0
    %169 = vmatpush1.bf16.msra.mxu0 0
    %170 = vmatprep.subr.bf16.mxu0 0
    %171 = vmatpush1.bf16.msra.mxu0 0
    %172 = vmatprep.subr.bf16.mxu0 0
    %173 = vmatpush1.bf16.msra.mxu0 0
    %174 = vmatprep.mubr.bf16.mxu0 0
    %175 = vmatmul.mubr.bf16.gmra.mrb[0].mxu0 %v140
    %v176 = vpop.f32.mrb[0].mxu0
    %v177 = vadd.f32 %v127, %v176
    %v178 = vpop.f32.mrb[0].mxu0
    %v179 = vpop.f32.mrb[0].mxu0
    %v180 = vpop.f32.mrb[0].mxu0
    %181 = vdwg.mxu0
    %v182 = vld [vmem:[%s4] sm:$0x1]
    %v184 = vlaneseq
    %v185 = vshrl.u32 %v184, 7
    %v186 = vsub.s32 0, %v185
    %v187 = vrot.slane %v182, %v186
    %v189 = vadd.f32 %v177, %v187
    %v190 = vmax.f32 %v189, 0.0
    %v191 = vpack.c.bf16 %v190, %v190
    %v192 = vld [vmem:[#allocation8] sm:$0xff]
    %v193 = vld [vmem:[#allocation8 + $0x8] sm:$0xff]
    %v194 = vld [vmem:[#allocation8 + $0x10] sm:$0xff]
    %v195 = vld [vmem:[#allocation8 + $0x18] sm:$0xff]
    %v196 = vld [vmem:[#allocation8 + $0x20] sm:$0xff]
    %v197 = vld [vmem:[#allocation8 + $0x28] sm:$0xff]
    %v198 = vld [vmem:[#allocation8 + $0x30] sm:$0xff]
    %v199 = vld [vmem:[#allocation8 + $0x38] sm:$0xff]
    %v200 = vld [vmem:[#allocation8 + $0x40] sm:$0xff]
    %v201 = vld [vmem:[#allocation8 + $0x48] sm:$0xff]
    %v202 = vld [vmem:[#allocation8 + $0x50] sm:$0xff]
    %v203 = vld [vmem:[#allocation8 + $0x58] sm:$0xff]
    %v204 = vld [vmem:[#allocation8 + $0x60] sm:$0xff]
    %v205 = vld [vmem:[#allocation8 + $0x68] sm:$0xff]
    %v206 = vld [vmem:[#allocation8 + $0x70] sm:$0xff]
    %v207 = vld [vmem:[#allocation8 + $0x78] sm:$0xff]
    %v208 = vld [vmem:[%s6] sm:$0x3]
    %v210 = vlaneseq
    %v211 = vshrl.u32 %v210, 7
    %v212 = vsub.s32 0, %v211
    %v213 = vrot.slane %v208, %v212
    %v214 = vlaneseq
    %v215 = vshrl.u32 %v214, 7
    %v216 = vsub.s32 1, %v215
    %v217 = vrot.slane %v208, %v216
    %v236 = vunpack.c.l.b16 %v192
    %v237 = vunpack.c.h.b16 %v192
    %v238 = vunpack.c.l.b16 %v193
    %v239 = vunpack.c.h.b16 %v193
    %v240 = vunpack.c.l.b16 %v194
    %v241 = vunpack.c.h.b16 %v194
    %v242 = vunpack.c.l.b16 %v195
    %v243 = vunpack.c.h.b16 %v195
    %v244 = vunpack.c.l.b16 %v196
    %v245 = vunpack.c.h.b16 %v196
    %v246 = vunpack.c.l.b16 %v197
    %v247 = vunpack.c.h.b16 %v197
    %v248 = vunpack.c.l.b16 %v198
    %v249 = vunpack.c.h.b16 %v198
    %v250 = vunpack.c.l.b16 %v199
    %v251 = vunpack.c.h.b16 %v199
    %v252 = vunpack.c.l.b16 %v200
    %v253 = vunpack.c.h.b16 %v200
    %v254 = vunpack.c.l.b16 %v201
    %v255 = vunpack.c.h.b16 %v201
    %v256 = vunpack.c.l.b16 %v202
    %v257 = vunpack.c.h.b16 %v202
    %v258 = vunpack.c.l.b16 %v203
    %v259 = vunpack.c.h.b16 %v203
    %v260 = vunpack.c.l.b16 %v204
    %v261 = vunpack.c.h.b16 %v204
    %v262 = vunpack.c.l.b16 %v205
    %v263 = vunpack.c.h.b16 %v205
    %v264 = vunpack.c.l.b16 %v206
    %v265 = vunpack.c.h.b16 %v206
    %v266 = vunpack.c.l.b16 %v207
    %v267 = vunpack.c.h.b16 %v207
    %v268 = vpack.c.b16 %v238, %v236
    %v269 = vpack.c.b16 %v239, %v237
    %v270 = vpack.c.b16 %v242, %v240
    %v271 = vpack.c.b16 %v243, %v241
    %v272 = vpack.c.b16 %v246, %v244
    %v273 = vpack.c.b16 %v247, %v245
    %v274 = vpack.c.b16 %v250, %v248
    %v275 = vpack.c.b16 %v251, %v249
    %v276 = vpack.c.b16 %v254, %v252
    %v277 = vpack.c.b16 %v255, %v253
    %v278 = vpack.c.b16 %v258, %v256
    %v279 = vpack.c.b16 %v259, %v257
    %v280 = vpack.c.b16 %v262, %v260
    %v281 = vpack.c.b16 %v263, %v261
    %v282 = vpack.c.b16 %v266, %v264
    %v283 = vpack.c.b16 %v267, %v265
    %300 = vmatprep.subr.bf16.mxu0 %v269
    %301 = vmatpush1.bf16.msra.mxu0 %v268
    %302 = vmatprep.subr.bf16.mxu0 %v271
    %303 = vmatpush1.bf16.msra.mxu0 %v270
    %304 = vmatprep.subr.bf16.mxu0 %v273
    %305 = vmatpush1.bf16.msra.mxu0 %v272
    %306 = vmatprep.subr.bf16.mxu0 %v275
    %307 = vmatpush1.bf16.msra.mxu0 %v274
    %308 = vmatprep.subr.bf16.mxu0 %v277
    %309 = vmatpush1.bf16.msra.mxu0 %v276
    %310 = vmatprep.subr.bf16.mxu0 %v279
    %311 = vmatpush1.bf16.msra.mxu0 %v278
    %312 = vmatprep.subr.bf16.mxu0 %v281
    %313 = vmatpush1.bf16.msra.mxu0 %v280
    %314 = vmatprep.subr.bf16.mxu0 %v283
    %315 = vmatpush1.bf16.msra.mxu0 %v282
    %316 = vmatprep.subr.bf16.mxu0 0
    %317 = vmatpush1.bf16.msra.mxu0 0
    %318 = vmatprep.subr.bf16.mxu0 0
    %319 = vmatpush1.bf16.msra.mxu0 0
    %320 = vmatprep.subr.bf16.mxu0 0
    %321 = vmatpush1.bf16.msra.mxu0 0
    %322 = vmatprep.subr.bf16.mxu0 0
    %323 = vmatpush1.bf16.msra.mxu0 0
    %324 = vmatprep.subr.bf16.mxu0 0
    %325 = vmatpush1.bf16.msra.mxu0 0
    %326 = vmatprep.subr.bf16.mxu0 0
    %327 = vmatpush1.bf16.msra.mxu0 0
    %328 = vmatprep.subr.bf16.mxu0 0
    %329 = vmatpush1.bf16.msra.mxu0 0
    %330 = vmatprep.subr.bf16.mxu0 0
    %331 = vmatpush1.bf16.msra.mxu0 0
    %332 = vmatprep.mubr.bf16.mxu0 0
    %333 = vmatmul.mubr.bf16.gmra.mrb[0].mxu0 %v191
    %v334 = vpop.f32.mrb[0].mxu0
    %v335 = vadd.f32 %v213, %v334
    %v336 = vpop.f32.mrb[0].mxu0
    %v337 = vadd.f32 %v217, %v336
    %v338 = vpop.f32.mrb[0].mxu0
    %v339 = vpop.f32.mrb[0].mxu0
    %340 = vdwg.mxu0
    %v341 = vtanh.pop %v335
    %v342 = vtanh.pop %v337
    %343 = vst [vmem:[#allocation10] sm:$0xff] %v341
    %344 = vst [vmem:[#allocation10 + $0x8] sm:$0xff] %v342
    // Predicated region
    $region46: #{tpu_custom_call.1} parent=1 // pred_check
      _
    $region47: #{tpu_custom_call.1} parent=1 // pred_check_branch
      %346 = sbr.rel (0) target = $region49
    $region48: #{tpu_custom_call.1} parent=1 // pred_region
      %s348 = ssub.s32 256, 256
      %349 = vsyncadd [#allocation4], %s348
      %s351 = sshll.u32 [#allocation10], 4
      %s352 = int_to_ptr.vmem [resolvable:$true] %s351
      %354 = dma.vmem_to_hbm [thread:$0]  %s352, 256, %s7, [#allocation4]
    $region49: #{tpu_custom_call.1} parent=1 // pred_fallthru
      _
    // Predicated region
    $region50: #{tpu_custom_call.1} parent=1 // pred_check
      _
    $region51: #{tpu_custom_call.1} parent=1 // pred_check_branch
      %356 = sbr.rel (0) target = $region53
    $region52: #{tpu_custom_call.1} parent=1 // pred_region
      %357 = dma.done [#allocation4], 256
    $region53: #{tpu_custom_call.1} parent=1 // pred_fallthru
      _
    %358 = vsyncpa [#allocation3], 1
    %359 = vsyncpa [#allocation6], 1
    %360 = vsyncpa [#allocation9], 1
    %361 = vsyncpa [#allocation4], 1

</llo_original>
